<compile_context>
chip_gen: v5e
topology: v5e:2x2
jax: 0.10.0
libtpu: 0.0.40
codegen_flags: <defaults>
</compile_context>

<pallas_src>
import jax
import jax.numpy as jnp
from jax.experimental import pallas as pl
from jax.experimental.pallas import tpu as pltpu


def _round_up(x, m):
    return ((x + m - 1) // m) * m


def _supports_single_buffering():
    """Probe once whether this JAX exposes pipeline_mode / pl.Buffered."""
    try:
        pl.BlockSpec((8, 128), lambda b: (0, 0), pipeline_mode=pl.Buffered(1))
        return True
    except Exception:
        return False


_SINGLE_BUFFERED_WEIGHTS = _supports_single_buffering()


def _resident_spec(shape, index_map):
    """BlockSpec for a VMEM-resident (constant index_map) operand.

    Single-buffered when supported (the block never changes, so a second
    pipeline buffer is pure waste).  The double-buffered fallback is NOT
    silent: _SINGLE_BUFFERED_WEIGHTS feeds the VMEM budget below.
    """
    if _SINGLE_BUFFERED_WEIGHTS:
        return pl.BlockSpec(shape, index_map, pipeline_mode=pl.Buffered(1))
    return pl.BlockSpec(shape, index_map)


def _vmem_capacity_bytes():
    """Best-effort physical VMEM capacity; conservative fallback = v7x 64 MiB."""
    try:
        cap = int(pltpu.get_tpu_info().vmem_capacity_bytes)
        if cap > 0:
            return cap
    except Exception:
        pass
    return 64 << 20


def _make_mlp_kernel(n_weights):
    """Fused MLP kernel: chained (ReLU ->) matmul entirely in VMEM.

    Weights arrive already transposed to [in, out], so each layer is a plain
    `h @ W` on the MXU.  Accumulation is f32; operands are the weights' dtype.
    """
    def kernel(*refs):
        x_ref = refs[0]
        w_refs = refs[1:1 + n_weights]
        o_ref = refs[1 + n_weights]

        h = x_ref[...]                               # already in MXU operand dtype
        for i in range(n_weights):
            if i > 0:
                h = jnp.maximum(h, 0.0)              # ReLU on the f32 accumulator
            w = w_refs[i][...]                       # [in, out], pre-transposed
            h = jnp.dot(h.astype(w.dtype), w,
                        preferred_element_type=jnp.float32)
        o_ref[...] = h.astype(o_ref.dtype)
    return kernel


def dnn_forward(x, weights, *, tile_batch=1024, matmul_dtype=jnp.bfloat16):
    """Run the fused MLP Pallas kernel.

    x:       [batch, input_dim] array.
    weights: list of [out_features, in_features] arrays (torch.nn.Linear
             layout); the last one has out_features == 1.
    tile_batch:   target batch tile (256-aligned when large, else 8-aligned).
    matmul_dtype: MXU operand dtype.  bf16 (default) is the native v6e/v7x MXU
                  path with f32 accumulation (~1e-2 divergence from torch f32);
                  pass jnp.float32 for exact-parity checks.
    """
    matmul_dtype = jnp.dtype(matmul_dtype)
    x = jnp.asarray(x).astype(matmul_dtype)          # bf16 halves the x DMA
    batch, in_dim = x.shape
    n = len(weights)
    out_dim = int(weights[-1].shape[0])

    # --- weight preparation (done once, outside the kernel) -----------------
    # Pre-transpose to [in, out]; cast to the MXU operand dtype.  The final
    # layer keeps its true width (typically 1): the (tb, out_dim) store is a
    # masked vst whose cost hides under DMA, while HBM writeback shrinks to
    # only the real columns (vs the old 128-lane zero pad).
    wt = [jnp.asarray(w, jnp.float32).T.astype(matmul_dtype) for w in weights]

    # --- batch tiling --------------------------------------------------------
    # Pad the batch with zero rows so the grid divides evenly; bias-free layers
    # map zero rows to zero, and padded rows are sliced off below.
    tb = min(int(tile_batch), _round_up(batch, 8))
    align = 256 if tb >= 256 else 8      # match 256-wide MXU M dim when large
    tb = _round_up(tb, align)
    batch_pad = _round_up(batch, tb)
    if batch_pad != batch:
        x = jnp.pad(x, ((0, batch_pad - batch), (0, 0)))
    grid = (batch_pad // tb,)

    # --- explicit VMEM budget ------------------------------------------------
    weight_bufs = 1 if _SINGLE_BUFFERED_WEIGHTS else 2
    weight_bytes = weight_bufs * sum(int(w.size) * w.dtype.itemsize for w in wt)
    io_bytes = (2 * tb * in_dim * matmul_dtype.itemsize      # double-buffered x
                + 2 * tb * out_dim * 4)                      # double-buffered out
    widest = max([in_dim] + [int(w.shape[1]) for w in wt])
    act_bytes = 2 * tb * widest * 4                          # f32 layer temporaries
    need = weight_bytes + io_bytes + act_bytes + (4 << 20)   # + headroom
    cap = int(0.75 * _vmem_capacity_bytes())
    if need > cap:
        # TODO(synk): for very wide layers, K/N-tile the offending weight with
        # an inner pltpu.emit_pipeline over an HBM-resident (memory_space=pl.ANY)
        # ref instead of shrinking tb.
        raise ValueError(
            f"DNN weights + activations need ~{need >> 20} MiB VMEM but only "
            f"~{cap >> 20} MiB is available; reduce tile_batch / layer widths "
            f"or use a K/N-tiled variant.")
    vmem_limit = int(min(max(need, 32 << 20), cap))

    kernel = _make_mlp_kernel(n)

    x_spec = pl.BlockSpec((tb, in_dim), lambda b: (b, 0))
    w_specs = [_resident_spec(w.shape, lambda b: (0, 0)) for w in wt]
    out_spec = pl.BlockSpec((tb, out_dim), lambda b: (b, 0))

    # Advisory cost estimate so XLA schedules neighbours around the custom call.
    flops = 2 * batch_pad * sum(int(w.shape[0]) * int(w.shape[1])
                                for w in weights)
    bytes_accessed = (batch_pad * in_dim * matmul_dtype.itemsize
                      + sum(int(w.size) * w.dtype.itemsize for w in wt)
                      + batch_pad * out_dim * 4)
    cost = pl.CostEstimate(flops=flops, transcendentals=0,
                           bytes_accessed=bytes_accessed)

    # "parallel" lets v7x's two TensorCores shard the batch grid axis (no-op on
    # single-TC v5e/v6e).
    # TODO(synk): if a v7x profile shows one TC idle, switch this axis to
    # pltpu.CORE_PARALLEL.
    out = pl.pallas_call(
        kernel,
        out_shape=jax.ShapeDtypeStruct((batch_pad, out_dim), jnp.float32),
        grid=grid,
        in_specs=[x_spec] + w_specs,
        out_specs=out_spec,
        compiler_params=pltpu.CompilerParams(
            dimension_semantics=("parallel",),
            vmem_limit_bytes=vmem_limit),
        cost_estimate=cost,
    )(x, *wt)

    return out[:batch]


def init_dnn_params(key, input_dim, hidden_layers):
    """Deterministic init mimicking torch.nn.Linear (uniform(+-1/sqrt(in)))."""
    dims_in = [input_dim] + list(hidden_layers)
    dims_out = list(hidden_layers) + [1]
    weights = []
    for d_in, d_out in zip(dims_in, dims_out):
        key, sub = jax.random.split(key)
        bound = 1.0 / jnp.sqrt(jnp.float32(d_in))
        w = jax.random.uniform(sub, (d_out, d_in), jnp.float32,
                               minval=-bound, maxval=bound)
        weights.append(w)
    return weights


def dnn_forward_ref(x, weights):
    """Plain-JAX reference of the PyTorch forward (eval mode)."""
    h = x
    for i, w in enumerate(weights):
        if i > 0:
            h = jnp.maximum(h, 0.0)
        h = h @ w.T
    return h


if __name__ == "__main__":
    input_dim = 32
    hidden_layers = [64, 32]

    key = jax.random.PRNGKey(0)
    key, xk = jax.random.split(key)
    weights = init_dnn_params(key, input_dim, hidden_layers)

    # --- test 1: basic shape, exact f32 parity -------------------------------
    batch = 8
    x = jax.random.normal(xk, (batch, input_dim), jnp.float32)
    ref = dnn_forward_ref(x, weights)
    out = jax.block_until_ready(
        dnn_forward(x, weights, matmul_dtype=jnp.float32))
    assert out.shape == (batch, 1), out.shape
    assert jnp.allclose(out, ref, atol=1e-5, rtol=1e-5)

    # --- test 2: non-multiple-of-tile batch, multi-step grid, f32 ------------
    batch2 = 37
    key, xk2 = jax.random.split(key)
    x2 = jax.random.normal(xk2, (batch2, input_dim), jnp.float32)
    out2 = jax.block_until_ready(
        dnn_forward(x2, weights, tile_batch=8, matmul_dtype=jnp.float32))
    ref2 = dnn_forward_ref(x2, weights)
    assert out2.shape == (batch2, 1), out2.shape
    assert jnp.allclose(out2, ref2, atol=1e-5, rtol=1e-5)

    # --- test 3: default bf16 operands / f32 accumulation (v6e/v7x MXU path) -
    out3 = jax.block_until_ready(dnn_forward(x, weights))
    assert out3.shape == (batch, 1), out3.shape
    assert jnp.allclose(out3, ref, atol=5e-2, rtol=5e-2)

    print("KERNEL_OK")
</pallas_src>

<mosaic_0001>
module attributes {stable_mosaic.version = 11 : i64} {
  func.func @kernel(%arg0: i32, %arg1: memref<8x32xf32, #tpu.memory_space<vmem>>, %arg2: memref<32x64xf32, #tpu.memory_space<vmem>>, %arg3: memref<64x32xf32, #tpu.memory_space<vmem>>, %arg4: memref<32x1xf32, #tpu.memory_space<vmem>>, %arg5: memref<8x1xf32, #tpu.memory_space<vmem>>) attributes {dimension_semantics = [#tpu.dimension_semantics<parallel>], iteration_bounds = array<i64: 1>, scalar_prefetch = 0 : i64, scratch_operands = 0 : i64, tpu.core_type = #tpu.core_type<tc>, window_params = [{transform_indices = @transform_0, window_bounds = array<i64: 8, 32>}, {pipeline_mode = #tpu.pipeline_mode<synchronous>, transform_indices = @transform_1, window_bounds = array<i64: 32, 64>}, {pipeline_mode = #tpu.pipeline_mode<synchronous>, transform_indices = @transform_2, window_bounds = array<i64: 64, 32>}, {pipeline_mode = #tpu.pipeline_mode<synchronous>, transform_indices = @transform_3, window_bounds = array<i64: 32, 1>}, {transform_indices = @transform_4, window_bounds = array<i64: 8, 1>}]} {
    %c0 = arith.constant 0 : index
    %c0_0 = arith.constant 0 : index
    %0 = vector.load %arg1[%c0, %c0_0] : memref<8x32xf32, #tpu.memory_space<vmem>>, vector<8x32xf32>
    %c0_1 = arith.constant 0 : index
    %c0_2 = arith.constant 0 : index
    %1 = vector.load %arg2[%c0_1, %c0_2] : memref<32x64xf32, #tpu.memory_space<vmem>>, vector<32x64xf32>
    %cst = arith.constant dense<0.000000e+00> : vector<8x64xf32>
    %2 = tpu.matmul %0, %1, %cst {dimension_numbers = #tpu.dot_dimension_numbers<[1], [0], [0], [1], [0, 0, 1, 1], [], []>} : vector<8x32xf32>, vector<32x64xf32>, vector<8x64xf32> -> vector<8x64xf32>
    %cst_3 = arith.constant 0.000000e+00 : f32
    %3 = vector.broadcast %cst_3 : f32 to vector<8x64xf32>
    %4 = arith.maximumf %2, %3 : vector<8x64xf32>
    %c0_4 = arith.constant 0 : index
    %c0_5 = arith.constant 0 : index
    %5 = vector.load %arg3[%c0_4, %c0_5] : memref<64x32xf32, #tpu.memory_space<vmem>>, vector<64x32xf32>
    %cst_6 = arith.constant dense<0.000000e+00> : vector<8x32xf32>
    %6 = tpu.matmul %4, %5, %cst_6 {dimension_numbers = #tpu.dot_dimension_numbers<[1], [0], [0], [1], [0, 0, 1, 1], [], []>} : vector<8x64xf32>, vector<64x32xf32>, vector<8x32xf32> -> vector<8x32xf32>
    %cst_7 = arith.constant 0.000000e+00 : f32
    %7 = vector.broadcast %cst_7 : f32 to vector<8x32xf32>
    %8 = arith.maximumf %6, %7 : vector<8x32xf32>
    %c0_8 = arith.constant 0 : index
    %c0_9 = arith.constant 0 : index
    %9 = vector.load %arg4[%c0_8, %c0_9] : memref<32x1xf32, #tpu.memory_space<vmem>>, vector<32x1xf32>
    %cst_10 = arith.constant dense<0.000000e+00> : vector<8x1xf32>
    %10 = tpu.matmul %8, %9, %cst_10 {dimension_numbers = #tpu.dot_dimension_numbers<[1], [0], [0], [1], [0, 0, 1, 1], [], []>} : vector<8x32xf32>, vector<32x1xf32>, vector<8x1xf32> -> vector<8x1xf32>
    %c0_11 = arith.constant 0 : index
    %c0_12 = arith.constant 0 : index
    %11 = vector.load %arg5[%c0_11, %c0_12] : memref<8x1xf32, #tpu.memory_space<vmem>>, vector<8x1xf32>
    tpu.vector_store %arg5[%c0_11, %c0_12], %10 {strides = array<i32>} : memref<8x1xf32, #tpu.memory_space<vmem>>, vector<8x1xf32>,
    return
  }
  func.func @transform_0(%arg0: i32) -> (i32, i32) {
    %c0_i32 = arith.constant 0 : i32
    %c0_i32_0 = arith.constant 0 : i32
    return %arg0, %c0_i32 : i32, i32
  }
  func.func @transform_1(%arg0: i32) -> (i32, i32) {
    %c0_i32 = arith.constant 0 : i32
    %c0_i32_0 = arith.constant 0 : i32
    %c0_i32_1 = arith.constant 0 : i32
    return %c0_i32, %c0_i32_0 : i32, i32
  }
  func.func @transform_2(%arg0: i32) -> (i32, i32) {
    %c0_i32 = arith.constant 0 : i32
    %c0_i32_0 = arith.constant 0 : i32
    %c0_i32_1 = arith.constant 0 : i32
    return %c0_i32, %c0_i32_0 : i32, i32
  }
  func.func @transform_3(%arg0: i32) -> (i32, i32) {
    %c0_i32 = arith.constant 0 : i32
    %c0_i32_0 = arith.constant 0 : i32
    %c0_i32_1 = arith.constant 0 : i32
    return %c0_i32, %c0_i32_0 : i32, i32
  }
  func.func @transform_4(%arg0: i32) -> (i32, i32) {
    %c0_i32 = arith.constant 0 : i32
    %c0_i32_0 = arith.constant 0 : i32
    return %arg0, %c0_i32 : i32, i32
  }
}

</mosaic_0001>

<llo_original>
// kernel: tpu_custom_call.1
$region0: #{tpu_custom_call.1}
  #allocation0 [shape = 'u32[]', space=smem, size = 0x4, offset = 0x4, fixed_abs, tag = 'smem constant byte address 0x4 - core index']
  #allocation1 [shape = 'u32[72,128]{1,0:T(1,128)}', space=vmem, size = 0x9000, scoped, tag = 'internal scratch']
  %s0 = inlined_call_operand.vmem [shape: f32[8,32], index: 0, kind: input, shape index: {}]
  %s1 = inlined_call_operand.vmem [shape: f32[32,64], index: 1, kind: input, shape index: {}]
  %s2 = inlined_call_operand.vmem [shape: f32[64,32], index: 2, kind: input, shape index: {}]
  %s3 = inlined_call_operand.vmem [shape: f32[32,1], index: 3, kind: input, shape index: {}]
  %s4 = inlined_call_operand.vmem [shape: f32[8,1], index: 4, kind: output, shape index: {}]
  %s5 = sld [smem:[#allocation0]]
  $region26: #{tpu_custom_call.1} parent=0
    _
  %s7 = ssub.s32 1, %s5
  %s8 = scalar_select 0, %s7, %s5
  // Predicated region
  $region2: #{tpu_custom_call.1} parent=0 // pred_check
    _
  $region3: #{tpu_custom_call.1} parent=0 // pred_check_branch
    %10 = sbr.rel (0) target = $region5
  $region4: #{tpu_custom_call.1} parent=0 // pred_region
    _
  $region5: #{tpu_custom_call.1} parent=0 // pred_fallthru
    _
  // Predicated region
  $region6: #{tpu_custom_call.1} parent=0 // pred_check
    _
  $region7: #{tpu_custom_call.1} parent=0 // pred_check_branch
    %12 = sbr.rel (0) target = $region9
  $region8: #{tpu_custom_call.1} parent=0 // pred_region
    _
  $region9: #{tpu_custom_call.1} parent=0 // pred_fallthru
    _
  // Predicated region
  $region10: #{tpu_custom_call.1} parent=0 // pred_check
    _
  $region11: #{tpu_custom_call.1} parent=0 // pred_check_branch
    %14 = sbr.rel (0) target = $region13
  $region12: #{tpu_custom_call.1} parent=0 // pred_region
    _
  $region13: #{tpu_custom_call.1} parent=0 // pred_fallthru
    _
  // Predicated region
  $region14: #{tpu_custom_call.1} parent=0 // pred_check
    _
  $region15: #{tpu_custom_call.1} parent=0 // pred_check_branch
    %16 = sbr.rel (0) target = $region17
  $region16: #{tpu_custom_call.1} parent=0 // pred_region
    _
  $region17: #{tpu_custom_call.1} parent=0 // pred_fallthru
    _
  %v17 = vld [vmem:[%s0] sm:$0xff]
  %v18 = vld [vmem:[%s1] sm:$0xff]
  %v19 = vld [vmem:[%s1 + $0x8] sm:$0xff]
  %v20 = vld [vmem:[%s1 + $0x10] sm:$0xff]
  %v21 = vld [vmem:[%s1 + $0x18] sm:$0xff]
  %vm22 = vcmask 261120
  %v24 = vsel %vm22, %v17, 0
  %26 = vmatpush.msra.mxu0 0.0
  %27 = vmatpush.msra.mxu0 0.0
  %28 = vmatpush.msra.mxu0 0.0
  %29 = vmatpush.msra.mxu0 0.0
  %30 = vmatpush.msra.mxu0 0.0
  %31 = vmatpush.msra.mxu0 0.0
  %32 = vmatpush.msra.mxu0 0.0
  %33 = vmatpush.msra.mxu0 0.0
  %34 = vmatpush.msra.mxu0 0.0
  %35 = vmatpush.msra.mxu0 0.0
  %36 = vmatpush.msra.mxu0 0.0
  %37 = vmatpush.msra.mxu0 0.0
  %38 = vmatpush.msra.mxu0 %v21
  %39 = vmatpush.msra.mxu0 %v20
  %40 = vmatpush.msra.mxu0 %v19
  %41 = vmatpush.msra.mxu0 %v18
  %42 = vmatmul.f32.gmra.mxu0 %v24
  %v43 = vpop.f32.mrf.mxu0
  %v44 = vadd.f32 0.0, %v43
  %45 = vdwg.mxu0
  %v46 = vmax.f32 %v44, 0.0
  %v47 = vld [vmem:[%s2] sm:$0xff]
  %v48 = vld [vmem:[%s2 + $0x8] sm:$0xff]
  %v49 = vld [vmem:[%s2 + $0x10] sm:$0xff]
  %v50 = vld [vmem:[%s2 + $0x18] sm:$0xff]
  %v51 = vld [vmem:[%s2 + $0x20] sm:$0xff]
  %v52 = vld [vmem:[%s2 + $0x28] sm:$0xff]
  %v53 = vld [vmem:[%s2 + $0x30] sm:$0xff]
  %v54 = vld [vmem:[%s2 + $0x38] sm:$0xff]
  %vm55 = vcmask 523264
  %v57 = vsel %vm55, %v46, 0
  %59 = vmatpush.msra.mxu0 0.0
  %60 = vmatpush.msra.mxu0 0.0
  %61 = vmatpush.msra.mxu0 0.0
  %62 = vmatpush.msra.mxu0 0.0
  %63 = vmatpush.msra.mxu0 0.0
  %64 = vmatpush.msra.mxu0 0.0
  %65 = vmatpush.msra.mxu0 0.0
  %66 = vmatpush.msra.mxu0 0.0
  %67 = vmatpush.msra.mxu0 %v54
  %68 = vmatpush.msra.mxu0 %v53
  %69 = vmatpush.msra.mxu0 %v52
  %70 = vmatpush.msra.mxu0 %v51
  %71 = vmatpush.msra.mxu0 %v50
  %72 = vmatpush.msra.mxu0 %v49
  %73 = vmatpush.msra.mxu0 %v48
  %74 = vmatpush.msra.mxu0 %v47
  %75 = vmatmul.f32.gmra.mxu0 %v57
  %v76 = vpop.f32.mrf.mxu0
  %v77 = vadd.f32 0.0, %v76
  %78 = vdwg.mxu0
  %v79 = vmax.f32 %v77, 0.0
  %v80 = vld [vmem:[%s3] sm:$0xff]
  %v81 = vld [vmem:[%s3 + $0x8] sm:$0xff]
  %v82 = vld [vmem:[%s3 + $0x10] sm:$0xff]
  %v83 = vld [vmem:[%s3 + $0x18] sm:$0xff]
  %v85 = vsel %vm22, %v79, 0
  %87 = vmatpush.msra.mxu0 0.0
  %88 = vmatpush.msra.mxu0 0.0
  %89 = vmatpush.msra.mxu0 0.0
  %90 = vmatpush.msra.mxu0 0.0
  %91 = vmatpush.msra.mxu0 0.0
  %92 = vmatpush.msra.mxu0 0.0
  %93 = vmatpush.msra.mxu0 0.0
  %94 = vmatpush.msra.mxu0 0.0
  %95 = vmatpush.msra.mxu0 0.0
  %96 = vmatpush.msra.mxu0 0.0
  %97 = vmatpush.msra.mxu0 0.0
  %98 = vmatpush.msra.mxu0 0.0
  %99 = vmatpush.msra.mxu0 %v83
  %100 = vmatpush.msra.mxu0 %v82
  %101 = vmatpush.msra.mxu0 %v81
  %102 = vmatpush.msra.mxu0 %v80
  %103 = vmatmul.f32.gmra.mxu0 %v85
  %v104 = vpop.f32.mrf.mxu0
  %v105 = vadd.f32 0.0, %v104
  %106 = vdwg.mxu0
  %vm107 = vcmask 7168
  %108 = vst.msk [vmem:[%s4] sm:$0xff] %vm107, %v105
  // Predicated region
  $region18: #{tpu_custom_call.1} parent=0 // pred_check
    _
  $region19: #{tpu_custom_call.1} parent=0 // pred_check_branch
    %110 = sbr.rel (0) target = $region21
  $region20: #{tpu_custom_call.1} parent=0 // pred_region
    _
  $region21: #{tpu_custom_call.1} parent=0 // pred_fallthru
    _
  // Predicated region
  $region22: #{tpu_custom_call.1} parent=0 // pred_check
    _
  $region23: #{tpu_custom_call.1} parent=0 // pred_check_branch
    %112 = sbr.rel (0) target = $region25
  $region24: #{tpu_custom_call.1} parent=0 // pred_region
    _
  $region25: #{tpu_custom_call.1} parent=0 // pred_fallthru
    _

</llo_original>
